<compile_context>
chip_gen: v7x
topology: tpu7x:2x2x1
jax: 0.10.0
libtpu: 0.0.40
codegen_flags: <defaults>
</compile_context>

<pallas_src>
import functools

import jax
import jax.numpy as jnp
from jax.experimental import pallas as pl
from jax.experimental.pallas import tpu as pltpu


# --------------------------------------------------------------------------
# Fused kernel: global-avg-pool + 1x1x1 conv (+bias) + sigmoid + gate multiply
#   x_ref    : (RB, S)   rows = Nb batches x C channels (batch-major, channel-minor)
#   wblk_ref : (RB, RB)  block-diagonal I_Nb (x) W  (f32)
#   b_ref    : (RB, 1)   bias tiled per batch        (f32)
#   o_ref    : (RB, S)
# --------------------------------------------------------------------------
def _se_gating_kernel(x_ref, wblk_ref, b_ref, o_ref, *, inv_s):
    x = x_ref[...]                                                    # (RB, S), native dtype

    # Global average pool: lane-axis reduction, accumulated in f32.
    pooled = jnp.sum(x, axis=-1, keepdims=True, dtype=jnp.float32) * inv_s   # (RB, 1)

    # Per-batch CxC contraction + bias as one tiny block-diagonal matmul
    # (no cross-sublane shuffles / reshapes inside the kernel), then sigmoid.
    logits = jnp.dot(wblk_ref[...], pooled,
                     preferred_element_type=jnp.float32) + b_ref[...]        # (RB, 1)
    gate = jax.nn.sigmoid(logits)                                             # (RB, 1) f32

    # Gate broadcast across lanes; cast the tiny gate down instead of the big tile up.
    o_ref[...] = (x * gate.astype(x.dtype)).astype(o_ref.dtype)


def _choose_nb(N, C, S, itemsize):
    """Pick batches-per-block Nb: sublane-dense, ~<=2 MiB x block, divides N."""
    sublane = {4: 8, 2: 16, 1: 32}.get(itemsize, 8)     # f32:8, bf16:16, int8:32
    target_block_bytes = 2 << 20                          # ~2 MiB per x block
    max_rows = 256                                        # cap block-diag weight (256x256 f32)

    divisors = [d for d in range(1, N + 1) if N % d == 0]

    def valid(nb):   # (8,128)-rule on the sublane dim: multiple of `sublane` or full extent
        rb = nb * C
        return (rb % sublane == 0) or (nb == N)

    def fits(nb):
        return (nb * C * S * itemsize) <= target_block_bytes and (nb * C) <= max_rows

    cands = [d for d in divisors if valid(d)]             # never empty: d == N always valid
    # Prefer keeping >=2 grid steps (both v7x TensorCores busy), then the largest
    # block under budget, then fall back to the smallest valid block.
    pref = [d for d in cands if fits(d) and N // d >= 2]
    if pref:
        return max(pref)
    pref = [d for d in cands if fits(d)]
    if pref:
        return max(pref)
    return min(cands)


def se_gating_forward(x, w, b):
    """x: (N, C, T, H, W); w: (C, C, 1, 1, 1); b: (C,)  ->  (N, C, T, H, W)."""
    N, C, T, H, W = x.shape
    S = T * H * W
    itemsize = jnp.dtype(x.dtype).itemsize

    Nb = _choose_nb(N, C, S, itemsize)
    RB = Nb * C                                   # rows per block (sublane axis)
    R = N * C                                     # total rows

    # Lane-dense + sublane-dense view: pure reshape of contiguous NCDHW, no transposes.
    x2 = x.reshape(R, S)
    w2 = w.reshape(C, C).astype(jnp.float32)
    # Block-diagonal weights / tiled bias so the per-batch CxC conv is one matmul.
    w_blk = jnp.kron(jnp.eye(Nb, dtype=jnp.float32), w2)           # (RB, RB)
    b_blk = jnp.tile(b.astype(jnp.float32), Nb).reshape(RB, 1)     # (RB, 1)

    kernel = functools.partial(_se_gating_kernel, inv_s=1.0 / float(S))

    out = pl.pallas_call(
        kernel,
        out_shape=jax.ShapeDtypeStruct((R, S), x.dtype),
        grid_spec=pltpu.PrefetchScalarGridSpec(
            num_scalar_prefetch=0,
            grid=(N // Nb,),
            in_specs=[
                pl.BlockSpec((RB, S), lambda i: (i, 0)),
                pl.BlockSpec((RB, RB), lambda i: (0, 0)),
                pl.BlockSpec((RB, 1), lambda i: (0, 0)),
            ],
            out_specs=pl.BlockSpec((RB, S), lambda i: (i, 0)),
        ),
        compiler_params=pltpu.CompilerParams(
            dimension_semantics=("parallel",),
            # ~<=2 MiB blocks, double-buffered in+out (~8-9 MiB) -> well under 32 MiB,
            # which is safe on v5e/v6e (128 MiB) and v7x (64 MiB physical).
            vmem_limit_bytes=32 * 1024 * 1024,
        ),
    )(x2, w_blk, b_blk)
    return out.reshape(N, C, T, H, W)


# --------------------------------------------------------------------------
# Parameters (Conv3d(C, C, 1, bias=True)) + pure-JAX reference
# --------------------------------------------------------------------------
def init_se_params(key, inplanes):
    kw, kb = jax.random.split(key)
    w = 0.2 * jax.random.normal(kw, (inplanes, inplanes, 1, 1, 1), jnp.float32)
    b = 0.1 * jax.random.normal(kb, (inplanes,), jnp.float32)
    return w, b


def se_gating_reference(x, w, b):
    pooled = jnp.mean(x, axis=(2, 3, 4), keepdims=True)          # (N,C,1,1,1)
    w2 = w.reshape(w.shape[0], w.shape[1])                       # (C_out, C_in)
    y = jnp.einsum("oc,ncijk->noijk", w2, pooled)
    y = y + b[None, :, None, None, None]
    y = jax.nn.sigmoid(y)
    return x * y


if __name__ == "__main__":
    key = jax.random.PRNGKey(0)
    kx, kp = jax.random.split(key)

    N, C, T, H, W = 2, 4, 8, 16, 16
    x = jax.random.normal(kx, (N, C, T, H, W), jnp.float32)
    w, b = init_se_params(kp, C)

    out = jax.block_until_ready(se_gating_forward(x, w, b))
    ref = jax.block_until_ready(se_gating_reference(x, w, b))

    assert out.shape == (N, C, T, H, W), out.shape
    max_err = float(jnp.max(jnp.abs(out - ref)))
    assert jnp.allclose(out, ref, atol=1e-5, rtol=1e-5), max_err

    print("KERNEL_OK")
</pallas_src>

<mosaic_0001>
module attributes {stable_mosaic.version = 11 : i64} {
  func.func @_se_gating_kernel(%arg0: i32, %arg1: memref<8x2048xf32, #tpu.memory_space<vmem>>, %arg2: memref<8x8xf32, #tpu.memory_space<vmem>>, %arg3: memref<8x1xf32, #tpu.memory_space<vmem>>, %arg4: memref<8x2048xf32, #tpu.memory_space<vmem>>) attributes {dimension_semantics = [#tpu.dimension_semantics<parallel>], iteration_bounds = array<i64: 1>, scalar_prefetch = 0 : i64, scratch_operands = 0 : i64, tpu.core_type = #tpu.core_type<tc>, window_params = [{transform_indices = @transform_0, window_bounds = array<i64: 8, 2048>}, {pipeline_mode = #tpu.pipeline_mode<synchronous>, transform_indices = @transform_1, window_bounds = array<i64: 8, 8>}, {pipeline_mode = #tpu.pipeline_mode<synchronous>, transform_indices = @transform_2, window_bounds = array<i64: 8, 1>}, {transform_indices = @transform_3, window_bounds = array<i64: 8, 2048>}]} {
    %c0 = arith.constant 0 : index
    %c0_0 = arith.constant 0 : index
    %0 = vector.load %arg1[%c0, %c0_0] : memref<8x2048xf32, #tpu.memory_space<vmem>>, vector<8x2048xf32>
    %cst = arith.constant dense<0.000000e+00> : vector<8xf32>
    %1 = vector.multi_reduction <add>, %0, %cst [1] : vector<8x2048xf32> to vector<8xf32>
    %2 = vector.shape_cast %1 : vector<8xf32> to vector<8x1xf32>
    %cst_1 = arith.constant 4.8828125E-4 : f32
    %3 = vector.broadcast %cst_1 : f32 to vector<8x1xf32>
    %4 = arith.mulf %2, %3 : vector<8x1xf32>
    %c0_2 = arith.constant 0 : index
    %c0_3 = arith.constant 0 : index
    %5 = vector.load %arg2[%c0_2, %c0_3] : memref<8x8xf32, #tpu.memory_space<vmem>>, vector<8x8xf32>
    %cst_4 = arith.constant dense<0.000000e+00> : vector<8x1xf32>
    %6 = tpu.matmul %5, %4, %cst_4 {dimension_numbers = #tpu.dot_dimension_numbers<[1], [0], [0], [1], [0, 0, 1, 1], [], []>} : vector<8x8xf32>, vector<8x1xf32>, vector<8x1xf32> -> vector<8x1xf32>
    %c0_5 = arith.constant 0 : index
    %c0_6 = arith.constant 0 : index
    %7 = vector.load %arg3[%c0_5, %c0_6] : memref<8x1xf32, #tpu.memory_space<vmem>>, vector<8x1xf32>
    %8 = arith.addf %6, %7 : vector<8x1xf32>
    %9 = arith.negf %8 : vector<8x1xf32>
    %10 = math.exp %9 : vector<8x1xf32>
    %cst_7 = arith.constant 1.000000e+00 : f32
    %11 = vector.broadcast %cst_7 : f32 to vector<8x1xf32>
    %12 = arith.addf %11, %10 : vector<8x1xf32>
    %13 = arith.divf %11, %12 : vector<8x1xf32>
    %14 = vector.broadcast %13 : vector<8x1xf32> to vector<8x2048xf32>
    %15 = arith.mulf %0, %14 : vector<8x2048xf32>
    %c0_8 = arith.constant 0 : index
    %c0_9 = arith.constant 0 : index
    %16 = vector.load %arg4[%c0_8, %c0_9] : memref<8x2048xf32, #tpu.memory_space<vmem>>, vector<8x2048xf32>
    tpu.vector_store %arg4[%c0_8, %c0_9], %15 {strides = array<i32>} : memref<8x2048xf32, #tpu.memory_space<vmem>>, vector<8x2048xf32>,
    return
  }
  func.func @transform_0(%arg0: i32) -> (i32, i32) {
    %c0_i32 = arith.constant 0 : i32
    %c0_i32_0 = arith.constant 0 : i32
    return %arg0, %c0_i32 : i32, i32
  }
  func.func @transform_1(%arg0: i32) -> (i32, i32) {
    %c0_i32 = arith.constant 0 : i32
    %c0_i32_0 = arith.constant 0 : i32
    %c0_i32_1 = arith.constant 0 : i32
    return %c0_i32, %c0_i32_0 : i32, i32
  }
  func.func @transform_2(%arg0: i32) -> (i32, i32) {
    %c0_i32 = arith.constant 0 : i32
    %c0_i32_0 = arith.constant 0 : i32
    %c0_i32_1 = arith.constant 0 : i32
    return %c0_i32, %c0_i32_0 : i32, i32
  }
  func.func @transform_3(%arg0: i32) -> (i32, i32) {
    %c0_i32 = arith.constant 0 : i32
    %c0_i32_0 = arith.constant 0 : i32
    return %arg0, %c0_i32 : i32, i32
  }
}

</mosaic_0001>

<llo_original>
// kernel: tpu_custom_call.1
$region0: #{tpu_custom_call.1}
  #allocation0 [shape = 'u32[]', space=smem, size = 0x4, offset = 0x4, fixed_abs, tag = 'smem constant byte address 0x4 - core index']
  #allocation1 [shape = 'u32[144,128]{1,0:T(1,128)}', space=vmem, size = 0x12000, scoped, tag = 'internal scratch']
  %s0 = inlined_call_operand.hbm [shape: f32[8,2048], index: 0, kind: input, shape index: {}]
  %s1 = inlined_call_operand.vmem [shape: f32[8,8], index: 1, kind: input, shape index: {}]
  %s2 = inlined_call_operand.vmem [shape: f32[8,1], index: 2, kind: input, shape index: {}]
  %s3 = inlined_call_operand.hbm [shape: f32[8,2048], index: 3, kind: output, shape index: {}]
  %s4 = sld [smem:[#allocation0]]
  $region26: #{tpu_custom_call.1} parent=0
    _
  %s6 = ssub.s32 1, %s4
  %s7 = scalar_select 0, %s6, %s4
  $region1: #{tpu_custom_call.1} parent=0
    #allocation2 [shape = 'u8[65536]{0}', space=vmem, size = 0x10000, scoped, tag = 'input window, operand 0, single buffered']
    #allocation3 [shape = 's32[1]{0}', space=sflag, size = 0x4, scoped, tag = 'scoped memory for tpu_custom_call.1']
    #allocation4 [shape = 's32[1]{0}', space=sflag, size = 0x4, scoped, tag = 'scoped memory for tpu_custom_call.1']
    #allocation5 [shape = 'u8[65536]{0}', space=vmem, size = 0x10000, scoped, tag = 'output window, operand 0, single buffered']
    %8 = vsyncpa [#allocation3], 0
    %9 = vsyncpa [#allocation4], 0
    // Predicated region
    $region2: #{tpu_custom_call.1} parent=1 // pred_check
      _
    $region3: #{tpu_custom_call.1} parent=1 // pred_check_branch
      %11 = sbr.rel (0) target = $region5
    $region4: #{tpu_custom_call.1} parent=1 // pred_region
      %s13 = ssub.s32 2048, 2048
      %14 = vsyncadd [#allocation3], %s13
      %s16 = sshll.u32 [#allocation2], 4
      %s17 = int_to_ptr.vmem [resolvable:$true] %s16
      %19 = dma.hbm_to_vmem [thread:$0]  %s0, 2048, %s17, [#allocation3]
    $region5: #{tpu_custom_call.1} parent=1 // pred_fallthru
      _
    // Predicated region
    $region6: #{tpu_custom_call.1} parent=1 // pred_check
      _
    $region7: #{tpu_custom_call.1} parent=1 // pred_check_branch
      %21 = sbr.rel (0) target = $region9
    $region8: #{tpu_custom_call.1} parent=1 // pred_region
      _
    $region9: #{tpu_custom_call.1} parent=1 // pred_fallthru
      _
    // Predicated region
    $region10: #{tpu_custom_call.1} parent=1 // pred_check
      _
    $region11: #{tpu_custom_call.1} parent=1 // pred_check_branch
      %23 = sbr.rel (0) target = $region13
    $region12: #{tpu_custom_call.1} parent=1 // pred_region
      _
    $region13: #{tpu_custom_call.1} parent=1 // pred_fallthru
      _
    // Predicated region
    $region14: #{tpu_custom_call.1} parent=1 // pred_check
      _
    $region15: #{tpu_custom_call.1} parent=1 // pred_check_branch
      %25 = sbr.rel (0) target = $region17
    $region16: #{tpu_custom_call.1} parent=1 // pred_region
      %26 = dma.done [#allocation3], 2048
    $region17: #{tpu_custom_call.1} parent=1 // pred_fallthru
      _
    %v27 = vld [vmem:[#allocation2] sm:$0xff]
    %v28 = vld [vmem:[#allocation2 + $0x8] sm:$0xff]
    %v29 = vld [vmem:[#allocation2 + $0x10] sm:$0xff]
    %v30 = vld [vmem:[#allocation2 + $0x18] sm:$0xff]
    %v31 = vld [vmem:[#allocation2 + $0x20] sm:$0xff]
    %v32 = vld [vmem:[#allocation2 + $0x28] sm:$0xff]
    %v33 = vld [vmem:[#allocation2 + $0x30] sm:$0xff]
    %v34 = vld [vmem:[#allocation2 + $0x38] sm:$0xff]
    %v35 = vld [vmem:[#allocation2 + $0x40] sm:$0xff]
    %v36 = vld [vmem:[#allocation2 + $0x48] sm:$0xff]
    %v37 = vld [vmem:[#allocation2 + $0x50] sm:$0xff]
    %v38 = vld [vmem:[#allocation2 + $0x58] sm:$0xff]
    %v39 = vld [vmem:[#allocation2 + $0x60] sm:$0xff]
    %v40 = vld [vmem:[#allocation2 + $0x68] sm:$0xff]
    %v41 = vld [vmem:[#allocation2 + $0x70] sm:$0xff]
    %v42 = vld [vmem:[#allocation2 + $0x78] sm:$0xff]
    %v43 = vadd.f32 %v27, %v28
    %v44 = vadd.f32 %v43, %v29
    %v45 = vadd.f32 %v44, %v30
    %v46 = vadd.f32 %v45, %v31
    %v47 = vadd.f32 %v46, %v32
    %v48 = vadd.f32 %v47, %v33
    %v49 = vadd.f32 %v48, %v34
    %v50 = vadd.f32 %v49, %v35
    %v51 = vadd.f32 %v50, %v36
    %v52 = vadd.f32 %v51, %v37
    %v53 = vadd.f32 %v52, %v38
    %v54 = vadd.f32 %v53, %v39
    %v55 = vadd.f32 %v54, %v40
    %v56 = vadd.f32 %v55, %v41
    %v57 = vadd.f32 %v56, %v42
    %58 = vadd.xlane.f32.xlu0 %v57
    %v59 = vpop.xlane.xlu0 %58
    %v60 = vmul.f32 %v59, 0.00048828125
    %v61 = vld [vmem:[%s1] sm:$0xff]
    %v62 = vld [vmem:[%s2] sm:$0xff]
    %vm63 = vcmask 64512
    %v65 = vsel %vm63, %v61, 0
    %67 = vmatprep.subr.mxu0 0.0
    %68 = vmatpush1.msra.mxu0 %v60
    %69 = vmatprep.subr.mxu0 0.0
    %70 = vmatpush1.msra.mxu0 0.0
    %71 = vmatprep.subr.mxu0 0.0
    %72 = vmatpush1.msra.mxu0 0.0
    %73 = vmatprep.subr.mxu0 0.0
    %74 = vmatpush1.msra.mxu0 0.0
    %75 = vmatprep.subr.mxu0 0.0
    %76 = vmatpush1.msra.mxu0 0.0
    %77 = vmatprep.subr.mxu0 0.0
    %78 = vmatpush1.msra.mxu0 0.0
    %79 = vmatprep.subr.mxu0 0.0
    %80 = vmatpush1.msra.mxu0 0.0
    %81 = vmatprep.subr.mxu0 0.0
    %82 = vmatpush1.msra.mxu0 0.0
    %83 = vmatprep.subr.mxu0 0.0
    %84 = vmatpush1.msra.mxu0 0.0
    %85 = vmatprep.subr.mxu0 0.0
    %86 = vmatpush1.msra.mxu0 0.0
    %87 = vmatprep.subr.mxu0 0.0
    %88 = vmatpush1.msra.mxu0 0.0
    %89 = vmatprep.subr.mxu0 0.0
    %90 = vmatpush1.msra.mxu0 0.0
    %91 = vmatprep.subr.mxu0 0.0
    %92 = vmatpush1.msra.mxu0 0.0
    %93 = vmatprep.subr.mxu0 0.0
    %94 = vmatpush1.msra.mxu0 0.0
    %95 = vmatprep.subr.mxu0 0.0
    %96 = vmatpush1.msra.mxu0 0.0
    %97 = vmatprep.subr.mxu0 0.0
    %98 = vmatpush1.msra.mxu0 0.0
    %99 = vmatprep.subr.mxu0 0.0
    %100 = vmatpush1.msra.mxu0 0.0
    %101 = vmatprep.subr.mxu0 0.0
    %102 = vmatpush1.msra.mxu0 0.0
    %103 = vmatprep.subr.mxu0 0.0
    %104 = vmatpush1.msra.mxu0 0.0
    %105 = vmatprep.subr.mxu0 0.0
    %106 = vmatpush1.msra.mxu0 0.0
    %107 = vmatprep.subr.mxu0 0.0
    %108 = vmatpush1.msra.mxu0 0.0
    %109 = vmatprep.subr.mxu0 0.0
    %110 = vmatpush1.msra.mxu0 0.0
    %111 = vmatprep.subr.mxu0 0.0
    %112 = vmatpush1.msra.mxu0 0.0
    %113 = vmatprep.subr.mxu0 0.0
    %114 = vmatpush1.msra.mxu0 0.0
    %115 = vmatprep.subr.mxu0 0.0
    %116 = vmatpush1.msra.mxu0 0.0
    %117 = vmatprep.subr.mxu0 0.0
    %118 = vmatpush1.msra.mxu0 0.0
    %119 = vmatprep.subr.mxu0 0.0
    %120 = vmatpush1.msra.mxu0 0.0
    %121 = vmatprep.subr.mxu0 0.0
    %122 = vmatpush1.msra.mxu0 0.0
    %123 = vmatprep.subr.mxu0 0.0
    %124 = vmatpush1.msra.mxu0 0.0
    %125 = vmatprep.subr.mxu0 0.0
    %126 = vmatpush1.msra.mxu0 0.0
    %127 = vmatprep.subr.mxu0 0.0
    %128 = vmatpush1.msra.mxu0 0.0
    %129 = vmatprep.subr.mxu0 0.0
    %130 = vmatpush1.msra.mxu0 0.0
    %131 = vmatprep.mubr.f32.mxu0 0.0
    %132 = vmatmul.mubr.f32.gmra.mrb[0].mxu0 %v65
    %v133 = vpop.f32.mrb[0].mxu0
    %v134 = vadd.f32 %v62, %v133
    %v135 = vpop.f32.mrb[0].mxu0
    %136 = vdwg.mxu0
    %v137 = vxor.u32 %v134, 2147483648
    %v138 = vmul.f32 %v137, 1.442695
    %v139 = vpow.pop %v138
    %v140 = vadd.f32 %v139, 1.0
    %v141 = vrcp.pop %v140
    %v142 = vmul.f32 1.0, %v141
    %144 = vset.pattern.permute.xlu0 0
    %145 = vperm.xlu0 %144, %v142
    %v146 = vpop.permute.xlu0 %145
    %v148 = vmul.f32 %v27, %v146
    %v149 = vmul.f32 %v28, %v146
    %v150 = vmul.f32 %v29, %v146
    %v151 = vmul.f32 %v30, %v146
    %v152 = vmul.f32 %v31, %v146
    %v153 = vmul.f32 %v32, %v146
    %v154 = vmul.f32 %v33, %v146
    %v155 = vmul.f32 %v34, %v146
    %v156 = vmul.f32 %v35, %v146
    %v157 = vmul.f32 %v36, %v146
    %v158 = vmul.f32 %v37, %v146
    %v159 = vmul.f32 %v38, %v146
    %v160 = vmul.f32 %v39, %v146
    %v161 = vmul.f32 %v40, %v146
    %v162 = vmul.f32 %v41, %v146
    %v163 = vmul.f32 %v42, %v146
    %164 = vst [vmem:[#allocation5] sm:$0xff] %v148
    %165 = vst [vmem:[#allocation5 + $0x8] sm:$0xff] %v149
    %166 = vst [vmem:[#allocation5 + $0x10] sm:$0xff] %v150
    %167 = vst [vmem:[#allocation5 + $0x18] sm:$0xff] %v151
    %168 = vst [vmem:[#allocation5 + $0x20] sm:$0xff] %v152
    %169 = vst [vmem:[#allocation5 + $0x28] sm:$0xff] %v153
    %170 = vst [vmem:[#allocation5 + $0x30] sm:$0xff] %v154
    %171 = vst [vmem:[#allocation5 + $0x38] sm:$0xff] %v155
    %172 = vst [vmem:[#allocation5 + $0x40] sm:$0xff] %v156
    %173 = vst [vmem:[#allocation5 + $0x48] sm:$0xff] %v157
    %174 = vst [vmem:[#allocation5 + $0x50] sm:$0xff] %v158
    %175 = vst [vmem:[#allocation5 + $0x58] sm:$0xff] %v159
    %176 = vst [vmem:[#allocation5 + $0x60] sm:$0xff] %v160
    %177 = vst [vmem:[#allocation5 + $0x68] sm:$0xff] %v161
    %178 = vst [vmem:[#allocation5 + $0x70] sm:$0xff] %v162
    %179 = vst [vmem:[#allocation5 + $0x78] sm:$0xff] %v163
    // Predicated region
    $region18: #{tpu_custom_call.1} parent=1 // pred_check
      _
    $region19: #{tpu_custom_call.1} parent=1 // pred_check_branch
      %181 = sbr.rel (0) target = $region21
    $region20: #{tpu_custom_call.1} parent=1 // pred_region
      %s183 = ssub.s32 2048, 2048
      %184 = vsyncadd [#allocation4], %s183
      %s186 = sshll.u32 [#allocation5], 4
      %s187 = int_to_ptr.vmem [resolvable:$true] %s186
      %189 = dma.vmem_to_hbm [thread:$0]  %s187, 2048, %s3, [#allocation4]
    $region21: #{tpu_custom_call.1} parent=1 // pred_fallthru
      _
    // Predicated region
    $region22: #{tpu_custom_call.1} parent=1 // pred_check
      _
    $region23: #{tpu_custom_call.1} parent=1 // pred_check_branch
      %191 = sbr.rel (0) target = $region25
    $region24: #{tpu_custom_call.1} parent=1 // pred_region
      %192 = dma.done [#allocation4], 2048
    $region25: #{tpu_custom_call.1} parent=1 // pred_fallthru
      _
    %193 = vsyncpa [#allocation3], 1
    %194 = vsyncpa [#allocation4], 1

</llo_original>
